<compile_context>
chip_gen: v7x
topology: tpu7x:2x2x1
jax: 0.10.0
libtpu: 0.0.40
codegen_flags: <defaults>
</compile_context>

<pallas_src>
import jax
import jax.numpy as jnp
from jax.experimental import pallas as pl
from jax.experimental.pallas import tpu as pltpu


def _lora_kernel(alpha_ref, x_ref, a_ref, b_ref, o_ref, xa_ref):
    # Skinny matmul x @ A computed once per row tile (j == 0), reused for all out_dim
    # tiles j.  Scaling the (tm, rank) intermediate by alpha is mathematically identical
    # to scaling the output and ~out_dim/rank cheaper.
    @pl.when(pl.program_id(1) == 0)
    def _():
        xa = jnp.dot(x_ref[...], a_ref[...], preferred_element_type=jnp.float32)
        xa_ref[...] = xa * alpha_ref[0, 0]

    # Second matmul, fed from the f32 scratch; cast to the weights' dtype so bf16 weights
    # take the native bf16 MXU path.  Accumulation stays f32.
    out = jnp.dot(xa_ref[...].astype(b_ref.dtype), b_ref[...],
                  preferred_element_type=jnp.float32)
    o_ref[...] = out.astype(o_ref.dtype)


def _round_up(v, m):
    return ((v + m - 1) // m) * m


def _default_vmem_limit():
    """Generation-aware scoped-VMEM limit: ~0.7x of the per-core VMEM capacity."""
    cap = None
    try:
        cap = getattr(pltpu.get_tpu_info(), "vmem_capacity_bytes", None)
    except Exception:
        cap = None
    if not cap:
        cap = 64 * 1024 * 1024  # conservative fallback (v7x per-TensorCore VMEM)
    return int(0.7 * cap)


def _pick_tiles(M, in_dim, rank, out_dim, x_item, w_item, o_item, vmem_limit_bytes):
    """Pick (tm, tn) for a memory-bound kernel: biggest row tile that fits VMEM."""
    # out_dim is already padded to a 128 multiple by the wrapper.  Tile it only when it
    # is large (keeps the B tile + f32 output intermediate small); otherwise B is resident.
    if out_dim % 128 == 0 and out_dim >= 1024:
        if out_dim % 512 == 0:
            tn = 512
        elif out_dim % 256 == 0:
            tn = 256
        else:
            tn = 128
    else:
        tn = out_dim

    row_align = 16 if x_item == 2 else 8  # bf16 packs (16,128) per vreg

    # VMEM budget: x/out tiles and the B tile are double-buffered by the pipeline, A is
    # tiny but counted double-buffered too; add the f32 (tm,tn) pre-cast intermediate,
    # the (tm,rank) xa scratch, and ~2 MiB headroom for Mosaic internal scratch.
    budget = int(vmem_limit_bytes) - 2 * 1024 * 1024
    fixed = 2 * in_dim * rank * w_item + 2 * rank * tn * w_item
    per_row = (2 * in_dim * x_item      # x row tile (double-buffered)
               + 2 * tn * o_item        # output tile (double-buffered)
               + tn * 4                 # f32 matmul result before cast
               + rank * 4)              # xa scratch
    tm = row_align
    for cand in (2048, 1024, 512, 256, 128, 64, 32, 16, 8):
        if cand % row_align:
            continue
        if fixed + cand * per_row <= budget:
            tm = cand
            break
    # Don't allocate a row tile bigger than the (alignment-rounded) input.
    tm = min(tm, _round_up(M, row_align))
    # Prefer >=2 grid blocks along the row axis so both v7x TensorCores get work
    # (splitting on i is safe with the xa scratch; splitting on j is not).
    while pl.cdiv(M, tm) < 2 and tm > row_align and (tm // 2) % row_align == 0:
        tm //= 2
    # TODO(synk): add a K-tiled (in_dim-chunked) accumulation path so huge in_dim does not
    # force tm down on v7x's 64 MiB VMEM; current LoRA in_dims fit comfortably.
    return tm, tn


def _build_lora_call(M, in_dim, rank, out_dim, tm, tn, out_dtype,
                     vmem_limit_bytes, cost):
    grid = (pl.cdiv(M, tm), out_dim // tn)  # ragged M: OOB reads padded, OOB writes dropped

    in_specs = [
        pl.BlockSpec(memory_space=pltpu.MemorySpace.SMEM),   # alpha (1,1) runtime scalar
        pl.BlockSpec((tm, in_dim), lambda i, j: (i, 0)),     # x row tile (resident over j)
        pl.BlockSpec((in_dim, rank), lambda i, j: (0, 0)),   # A (resident)
        pl.BlockSpec((rank, tn), lambda i, j: (0, j)),       # B column tile
    ]
    out_specs = pl.BlockSpec((tm, tn), lambda i, j: (i, j))

    return pl.pallas_call(
        _lora_kernel,
        out_shape=jax.ShapeDtypeStruct((M, out_dim), out_dtype),
        grid_spec=pltpu.PrefetchScalarGridSpec(
            num_scalar_prefetch=0,
            grid=grid,
            in_specs=in_specs,
            out_specs=out_specs,
            scratch_shapes=[pltpu.VMEM((tm, rank), jnp.float32)],  # xa, carried over j
        ),
        compiler_params=pltpu.CompilerParams(
            # j carries the xa scratch -> must be "arbitrary"; megacore splits rows (i).
            dimension_semantics=("parallel", "arbitrary"),
            vmem_limit_bytes=int(vmem_limit_bytes),
        ),
        cost_estimate=cost,
    )


def lora_forward(x, A, B, alpha=0.01, *, out_dtype=None, tm=None, tn=None,
                 vmem_limit_bytes=None):
    """alpha * (x @ A @ B) via a Pallas TPU kernel, tiled over rows and (optionally) out_dim."""
    M, in_dim = x.shape
    in_dim_a, rank = A.shape
    rank_b, out_dim = B.shape
    assert in_dim == in_dim_a and rank == rank_b
    assert A.dtype == B.dtype, "LoRA factors A and B must share a dtype"
    out_dtype = jnp.dtype(out_dtype) if out_dtype is not None else jnp.dtype(x.dtype)

    if vmem_limit_bytes is None:
        vmem_limit_bytes = _default_vmem_limit()

    # Pad out_dim up to a 128-lane multiple so output stores are unmasked (lane-dense);
    # padded B columns are zero, so the padded output columns are exactly zero and sliced.
    pad_n = (-out_dim) % 128
    out_dim_p = out_dim + pad_n
    B_p = jnp.pad(B, ((0, 0), (0, pad_n))) if pad_n else B

    x_item = jnp.dtype(x.dtype).itemsize
    w_item = jnp.dtype(A.dtype).itemsize
    o_item = out_dtype.itemsize

    auto_tm, auto_tn = _pick_tiles(M, in_dim, rank, out_dim_p,
                                   x_item, w_item, o_item, vmem_limit_bytes)
    if tn is None:
        tn = auto_tn
    if tm is None:
        tm = auto_tm
    row_align = 16 if x_item == 2 else 8
    assert out_dim_p % tn == 0 and (tn == out_dim_p or tn % 128 == 0)
    assert tm % row_align == 0 or tm == M

    # alpha as a runtime SMEM scalar -> no recompile per distinct alpha value.
    alpha_arr = jnp.full((1, 1), alpha, dtype=jnp.float32)

    cost = pl.CostEstimate(
        flops=2 * M * rank * (in_dim + out_dim_p),
        transcendentals=0,
        bytes_accessed=(M * in_dim * x_item + in_dim * rank * w_item
                        + rank * out_dim_p * w_item + M * out_dim_p * o_item),
    )

    call = _build_lora_call(M, in_dim, rank, out_dim_p, tm, tn, out_dtype,
                            vmem_limit_bytes, cost)
    out = call(alpha_arr, x, A, B_p)
    return out[:, :out_dim] if pad_n else out


def init_lora_params(key, in_dim, out_dim, rank):
    # Matches the PyTorch __init__: A ~ N(0,1)/sqrt(rank), B = zeros.
    std_dev = 1.0 / jnp.sqrt(jnp.asarray(rank, jnp.float32))
    A = jax.random.normal(key, (in_dim, rank), dtype=jnp.float32) * std_dev
    B = jnp.zeros((rank, out_dim), dtype=jnp.float32)
    return A, B


if __name__ == "__main__":
    key = jax.random.PRNGKey(0)
    kx, kA, kB, kx2, kA2, kB2 = jax.random.split(key, 6)

    # --- small shapes consistent with the module's 2-D matmul input ---
    batch, in_dim, out_dim, rank = 8, 32, 32, 4
    alpha = 0.01

    x = jax.random.normal(kx, (batch, in_dim), dtype=jnp.float32)
    A, B = init_lora_params(kA, in_dim, out_dim, rank)
    # A fresh LoRA layer has B == 0 (all-zero output); perturb B so the check is non-trivial.
    B = B + 0.1 * jax.random.normal(kB, B.shape, dtype=jnp.float32)

    out = jax.block_until_ready(lora_forward(x, A, B, alpha))
    ref = alpha * (x @ A @ B)
    assert out.shape == (batch, out_dim)
    assert jnp.allclose(out, ref, atol=1e-5, rtol=1e-5)

    # --- exercise the tiled path: row tiles + out_dim tiles (tn=512) + bf16 I/O ---
    M2, in2, out2, rank2 = 256, 256, 1024, 8
    x2 = jax.random.normal(kx2, (M2, in2), dtype=jnp.float32)
    A2 = jax.random.normal(kA2, (in2, rank2), dtype=jnp.float32) / jnp.sqrt(
        jnp.asarray(rank2, jnp.float32))
    B2 = 0.1 * jax.random.normal(kB2, (rank2, out2), dtype=jnp.float32)
    ref2 = alpha * (x2 @ A2 @ B2)

    out2_f32 = jax.block_until_ready(lora_forward(x2, A2, B2, alpha))
    assert out2_f32.shape == (M2, out2)
    assert jnp.allclose(out2_f32, ref2, atol=1e-4, rtol=1e-2)

    out2_bf16 = jax.block_until_ready(
        lora_forward(x2.astype(jnp.bfloat16), A2.astype(jnp.bfloat16),
                     B2.astype(jnp.bfloat16), alpha))
    assert out2_bf16.dtype == jnp.bfloat16
    assert jnp.allclose(out2_bf16.astype(jnp.float32), ref2, atol=5e-3, rtol=5e-2)

    print("KERNEL_OK")
</pallas_src>

<mosaic_0001>
module attributes {stable_mosaic.version = 11 : i64} {
  func.func @_lora_kernel(%arg0: i32, %arg1: i32, %arg2: memref<1x1xf32, #tpu.memory_space<smem>>, %arg3: memref<8x32xf32, #tpu.memory_space<vmem>>, %arg4: memref<32x4xf32, #tpu.memory_space<vmem>>, %arg5: memref<4x128xf32, #tpu.memory_space<vmem>>, %arg6: memref<8x128xf32, #tpu.memory_space<vmem>>, %arg7: memref<8x4xf32, #tpu.memory_space<vmem>>) attributes {dimension_semantics = [#tpu.dimension_semantics<parallel>, #tpu.dimension_semantics<arbitrary>], iteration_bounds = array<i64: 1, 1>, scalar_prefetch = 0 : i64, scratch_operands = 1 : i64, tpu.core_type = #tpu.core_type<tc>, window_params = [{transform_indices = @transform_0, window_bounds = array<i64: 1, 1>}, {transform_indices = @transform_1, window_bounds = array<i64: 8, 32>}, {pipeline_mode = #tpu.pipeline_mode<synchronous>, transform_indices = @transform_2, window_bounds = array<i64: 32, 4>}, {transform_indices = @transform_3, window_bounds = array<i64: 4, 128>}, {transform_indices = @transform_4, window_bounds = array<i64: 8, 128>}]} {
    %c0_i32 = arith.constant 0 : i32
    %0 = arith.cmpi eq, %arg1, %c0_i32 : i32
    %1 = arith.extui %0 : i1 to i32
    %c0_i32_0 = arith.constant 0 : i32
    %2 = arith.cmpi ne, %1, %c0_i32_0 : i32
    scf.if %2 {
      %c0_6 = arith.constant 0 : index
      %c0_7 = arith.constant 0 : index
      %7 = vector.load %arg3[%c0_6, %c0_7] : memref<8x32xf32, #tpu.memory_space<vmem>>, vector<8x32xf32>
      %c0_8 = arith.constant 0 : index
      %c0_9 = arith.constant 0 : index
      %8 = vector.load %arg4[%c0_8, %c0_9] : memref<32x4xf32, #tpu.memory_space<vmem>>, vector<32x4xf32>
      %cst_10 = arith.constant dense<0.000000e+00> : vector<8x4xf32>
      %9 = tpu.matmul %7, %8, %cst_10 {dimension_numbers = #tpu.dot_dimension_numbers<[1], [0], [0], [1], [0, 0, 1, 1], [], []>} : vector<8x32xf32>, vector<32x4xf32>, vector<8x4xf32> -> vector<8x4xf32>
      %c0_11 = arith.constant 0 : index
      %c0_12 = arith.constant 0 : index
      %10 = memref.load %arg2[%c0_11, %c0_12] : memref<1x1xf32, #tpu.memory_space<smem>>
      %11 = vector.broadcast %10 : f32 to vector<8x4xf32>
      %12 = arith.mulf %9, %11 : vector<8x4xf32>
      %c0_13 = arith.constant 0 : index
      %c0_14 = arith.constant 0 : index
      %13 = vector.load %arg7[%c0_13, %c0_14] : memref<8x4xf32, #tpu.memory_space<vmem>>, vector<8x4xf32>
      tpu.vector_store %arg7[%c0_13, %c0_14], %12 {strides = array<i32>} : memref<8x4xf32, #tpu.memory_space<vmem>>, vector<8x4xf32>,
    } else {
    }
    %c0 = arith.constant 0 : index
    %c0_1 = arith.constant 0 : index
    %3 = vector.load %arg7[%c0, %c0_1] : memref<8x4xf32, #tpu.memory_space<vmem>>, vector<8x4xf32>
    %c0_2 = arith.constant 0 : index
    %c0_3 = arith.constant 0 : index
    %4 = vector.load %arg5[%c0_2, %c0_3] : memref<4x128xf32, #tpu.memory_space<vmem>>, vector<4x128xf32>
    %cst = arith.constant dense<0.000000e+00> : vector<8x128xf32>
    %5 = tpu.matmul %3, %4, %cst {dimension_numbers = #tpu.dot_dimension_numbers<[1], [0], [0], [1], [0, 0, 1, 1], [], []>} : vector<8x4xf32>, vector<4x128xf32>, vector<8x128xf32> -> vector<8x128xf32>
    %c0_4 = arith.constant 0 : index
    %c0_5 = arith.constant 0 : index
    %6 = vector.load %arg6[%c0_4, %c0_5] : memref<8x128xf32, #tpu.memory_space<vmem>>, vector<8x128xf32>
    tpu.vector_store %arg6[%c0_4, %c0_5], %5 {strides = array<i32>} : memref<8x128xf32, #tpu.memory_space<vmem>>, vector<8x128xf32>,
    return
  }
  func.func @transform_0(%arg0: i32, %arg1: i32) -> (i32, i32) {
    %c0_i32 = arith.constant 0 : i32
    %c0_i32_0 = arith.constant 0 : i32
    %c0_i32_1 = arith.constant 0 : i32
    return %c0_i32, %c0_i32_0 : i32, i32
  }
  func.func @transform_1(%arg0: i32, %arg1: i32) -> (i32, i32) {
    %c0_i32 = arith.constant 0 : i32
    %c0_i32_0 = arith.constant 0 : i32
    return %arg0, %c0_i32 : i32, i32
  }
  func.func @transform_2(%arg0: i32, %arg1: i32) -> (i32, i32) {
    %c0_i32 = arith.constant 0 : i32
    %c0_i32_0 = arith.constant 0 : i32
    %c0_i32_1 = arith.constant 0 : i32
    return %c0_i32, %c0_i32_0 : i32, i32
  }
  func.func @transform_3(%arg0: i32, %arg1: i32) -> (i32, i32) {
    %c0_i32 = arith.constant 0 : i32
    %c0_i32_0 = arith.constant 0 : i32
    return %c0_i32, %arg1 : i32, i32
  }
  func.func @transform_4(%arg0: i32, %arg1: i32) -> (i32, i32) {
    %c0_i32 = arith.constant 0 : i32
    return %arg0, %arg1 : i32, i32
  }
}

</mosaic_0001>

<llo_original>
// kernel: tpu_custom_call.1
$region0: #{tpu_custom_call.1}
  #allocation0 [shape = 'u32[]', space=smem, size = 0x4, offset = 0x4, fixed_abs, tag = 'smem constant byte address 0x4 - core index']
  #allocation1 [shape = 'u32[144,128]{1,0:T(1,128)}', space=vmem, size = 0x12000, scoped, tag = 'internal scratch']
  #allocation2 [shape = 'f32[8,4]{1,0:T(8,128)}', space=vmem, size = 0x1000, scoped, tag = 'scratch operand']
  #allocation3 [shape = 'f32[1,1]{1,0:T(1,128)S(6)}', space=smem, size = 0x200, scoped, tag = 'scoped memory for tpu_custom_call.1']
  %s0 = inlined_call_operand.<no memory space> [shape: f32[1,1], index: 0, kind: input, shape index: {}]
  %s1 = inlined_call_operand.vmem [shape: f32[8,32], index: 1, kind: input, shape index: {}]
  %s2 = inlined_call_operand.vmem [shape: f32[32,4], index: 2, kind: input, shape index: {}]
  %s3 = inlined_call_operand.vmem [shape: f32[4,128], index: 3, kind: input, shape index: {}]
  %s4 = inlined_call_operand.hbm [shape: f32[8,128], index: 4, kind: output, shape index: {}]
  %s5 = sld [smem:[#allocation0]]
  $region30: #{tpu_custom_call.1} parent=0
    _
  %s7 = ssub.s32 1, %s5
  %s8 = scalar_select 0, %s7, %s5
  %9 = sst [smem:[#allocation3]] %s0
  $region1: #{tpu_custom_call.1} parent=0
    #allocation4 [shape = 'u8[4096]{0}', space=vmem, size = 0x1000, scoped, tag = 'output window, operand 0, single buffered']
    #allocation5 [shape = 's32[1]{0}', space=sflag, size = 0x4, scoped, tag = 'scoped memory for tpu_custom_call.1']
    %10 = vsyncpa [#allocation5], 0
    // Predicated region
    $region2: #{tpu_custom_call.1} parent=1 // pred_check
      _
    $region3: #{tpu_custom_call.1} parent=1 // pred_check_branch
      %12 = sbr.rel (0) target = $region5
    $region4: #{tpu_custom_call.1} parent=1 // pred_region
      _
    $region5: #{tpu_custom_call.1} parent=1 // pred_fallthru
      _
    // Predicated region
    $region6: #{tpu_custom_call.1} parent=1 // pred_check
      _
    $region7: #{tpu_custom_call.1} parent=1 // pred_check_branch
      %14 = sbr.rel (0) target = $region9
    $region8: #{tpu_custom_call.1} parent=1 // pred_region
      _
    $region9: #{tpu_custom_call.1} parent=1 // pred_fallthru
      _
    // Predicated region
    $region10: #{tpu_custom_call.1} parent=1 // pred_check
      _
    $region11: #{tpu_custom_call.1} parent=1 // pred_check_branch
      %16 = sbr.rel (0) target = $region13
    $region12: #{tpu_custom_call.1} parent=1 // pred_region
      _
    $region13: #{tpu_custom_call.1} parent=1 // pred_fallthru
      _
    // Predicated region
    $region14: #{tpu_custom_call.1} parent=1 // pred_check
      _
    $region15: #{tpu_custom_call.1} parent=1 // pred_check_branch
      %18 = sbr.rel (0) target = $region17
    $region16: #{tpu_custom_call.1} parent=1 // pred_region
      _
    $region17: #{tpu_custom_call.1} parent=1 // pred_fallthru
      _
    %p19 = scmp.eq.s32.totalorder 0, 0
    // Predicated region
    $region18: #{tpu_custom_call.1} parent=1 // pred_check
      %p20 = pneg %p19
    $region19: #{tpu_custom_call.1} parent=1 // pred_check_branch
      %22 = sbr.rel (%p20) target = $region21
    $region20: #{tpu_custom_call.1} parent=1 // pred_region
      %v23 = vld [vmem:[%s1] sm:$0xff]
      %v24 = vld [vmem:[%s2] sm:$0xff]
      %v25 = vld [vmem:[%s2 + $0x8] sm:$0xff]
      %v26 = vld [vmem:[%s2 + $0x10] sm:$0xff]
      %v27 = vld [vmem:[%s2 + $0x18] sm:$0xff]
      %vm28 = vcmask 261120
      %v30 = vsel %vm28, %v23, 0
      %32 = vmatprep.subr.mxu0 0.0
      %33 = vmatpush1.msra.mxu0 %v24
      %34 = vmatprep.subr.mxu0 0.0
      %35 = vmatpush1.msra.mxu0 %v25
      %36 = vmatprep.subr.mxu0 0.0
      %37 = vmatpush1.msra.mxu0 %v26
      %38 = vmatprep.subr.mxu0 0.0
      %39 = vmatpush1.msra.mxu0 %v27
      %40 = vmatprep.subr.mxu0 0.0
      %41 = vmatpush1.msra.mxu0 0.0
      %42 = vmatprep.subr.mxu0 0.0
      %43 = vmatpush1.msra.mxu0 0.0
      %44 = vmatprep.subr.mxu0 0.0
      %45 = vmatpush1.msra.mxu0 0.0
      %46 = vmatprep.subr.mxu0 0.0
      %47 = vmatpush1.msra.mxu0 0.0
      %48 = vmatprep.subr.mxu0 0.0
      %49 = vmatpush1.msra.mxu0 0.0
      %50 = vmatprep.subr.mxu0 0.0
      %51 = vmatpush1.msra.mxu0 0.0
      %52 = vmatprep.subr.mxu0 0.0
      %53 = vmatpush1.msra.mxu0 0.0
      %54 = vmatprep.subr.mxu0 0.0
      %55 = vmatpush1.msra.mxu0 0.0
      %56 = vmatprep.subr.mxu0 0.0
      %57 = vmatpush1.msra.mxu0 0.0
      %58 = vmatprep.subr.mxu0 0.0
      %59 = vmatpush1.msra.mxu0 0.0
      %60 = vmatprep.subr.mxu0 0.0
      %61 = vmatpush1.msra.mxu0 0.0
      %62 = vmatprep.subr.mxu0 0.0
      %63 = vmatpush1.msra.mxu0 0.0
      %64 = vmatprep.subr.mxu0 0.0
      %65 = vmatpush1.msra.mxu0 0.0
      %66 = vmatprep.subr.mxu0 0.0
      %67 = vmatpush1.msra.mxu0 0.0
      %68 = vmatprep.subr.mxu0 0.0
      %69 = vmatpush1.msra.mxu0 0.0
      %70 = vmatprep.subr.mxu0 0.0
      %71 = vmatpush1.msra.mxu0 0.0
      %72 = vmatprep.subr.mxu0 0.0
      %73 = vmatpush1.msra.mxu0 0.0
      %74 = vmatprep.subr.mxu0 0.0
      %75 = vmatpush1.msra.mxu0 0.0
      %76 = vmatprep.subr.mxu0 0.0
      %77 = vmatpush1.msra.mxu0 0.0
      %78 = vmatprep.subr.mxu0 0.0
      %79 = vmatpush1.msra.mxu0 0.0
      %80 = vmatprep.subr.mxu0 0.0
      %81 = vmatpush1.msra.mxu0 0.0
      %82 = vmatprep.subr.mxu0 0.0
      %83 = vmatpush1.msra.mxu0 0.0
      %84 = vmatprep.subr.mxu0 0.0
      %85 = vmatpush1.msra.mxu0 0.0
      %86 = vmatprep.subr.mxu0 0.0
      %87 = vmatpush1.msra.mxu0 0.0
      %88 = vmatprep.subr.mxu0 0.0
      %89 = vmatpush1.msra.mxu0 0.0
      %90 = vmatprep.subr.mxu0 0.0
      %91 = vmatpush1.msra.mxu0 0.0
      %92 = vmatprep.subr.mxu0 0.0
      %93 = vmatpush1.msra.mxu0 0.0
      %94 = vmatprep.subr.mxu0 0.0
      %95 = vmatpush1.msra.mxu0 0.0
      %96 = vmatprep.mubr.f32.mxu0 0.0
      %97 = vmatmul.mubr.f32.gmra.mrb[0].mxu0 %v30
      %v98 = vpop.f32.mrb[0].mxu0
      %v99 = vadd.f32 0.0, %v98
      %v100 = vpop.f32.mrb[0].mxu0
      %101 = vdwg.mxu0
      %s102 = sld [smem:[#allocation3]]
      %v103 = vstv %s102
      %v104 = vmul.f32 %v99, %v103
      %vm105 = vcmask 31744
      %106 = vst.msk [vmem:[#allocation2] sm:$0xff] %vm105, %v104
    $region21: #{tpu_custom_call.1} parent=1 // pred_fallthru
      _
    %v107 = vld [vmem:[#allocation2] sm:$0xff]
    %v108 = vld [vmem:[%s3] sm:$0xf]
    %vm109 = vcmask 31744
    %v111 = vsel %vm109, %v107, 0
    %vm113 = vcmask 1043456
    %v115 = vsel %vm113, %v108, 0
    %117 = vmatprep.subr.mxu0 0.0
    %118 = vmatpush1.msra.mxu0 %v115
    %119 = vmatprep.subr.mxu0 0.0
    %120 = vmatpush1.msra.mxu0 0.0
    %121 = vmatprep.subr.mxu0 0.0
    %122 = vmatpush1.msra.mxu0 0.0
    %123 = vmatprep.subr.mxu0 0.0
    %124 = vmatpush1.msra.mxu0 0.0
    %125 = vmatprep.subr.mxu0 0.0
    %126 = vmatpush1.msra.mxu0 0.0
    %127 = vmatprep.subr.mxu0 0.0
    %128 = vmatpush1.msra.mxu0 0.0
    %129 = vmatprep.subr.mxu0 0.0
    %130 = vmatpush1.msra.mxu0 0.0
    %131 = vmatprep.subr.mxu0 0.0
    %132 = vmatpush1.msra.mxu0 0.0
    %133 = vmatprep.subr.mxu0 0.0
    %134 = vmatpush1.msra.mxu0 0.0
    %135 = vmatprep.subr.mxu0 0.0
    %136 = vmatpush1.msra.mxu0 0.0
    %137 = vmatprep.subr.mxu0 0.0
    %138 = vmatpush1.msra.mxu0 0.0
    %139 = vmatprep.subr.mxu0 0.0
    %140 = vmatpush1.msra.mxu0 0.0
    %141 = vmatprep.subr.mxu0 0.0
    %142 = vmatpush1.msra.mxu0 0.0
    %143 = vmatprep.subr.mxu0 0.0
    %144 = vmatpush1.msra.mxu0 0.0
    %145 = vmatprep.subr.mxu0 0.0
    %146 = vmatpush1.msra.mxu0 0.0
    %147 = vmatprep.subr.mxu0 0.0
    %148 = vmatpush1.msra.mxu0 0.0
    %149 = vmatprep.subr.mxu0 0.0
    %150 = vmatpush1.msra.mxu0 0.0
    %151 = vmatprep.subr.mxu0 0.0
    %152 = vmatpush1.msra.mxu0 0.0
    %153 = vmatprep.subr.mxu0 0.0
    %154 = vmatpush1.msra.mxu0 0.0
    %155 = vmatprep.subr.mxu0 0.0
    %156 = vmatpush1.msra.mxu0 0.0
    %157 = vmatprep.subr.mxu0 0.0
    %158 = vmatpush1.msra.mxu0 0.0
    %159 = vmatprep.subr.mxu0 0.0
    %160 = vmatpush1.msra.mxu0 0.0
    %161 = vmatprep.subr.mxu0 0.0
    %162 = vmatpush1.msra.mxu0 0.0
    %163 = vmatprep.subr.mxu0 0.0
    %164 = vmatpush1.msra.mxu0 0.0
    %165 = vmatprep.subr.mxu0 0.0
    %166 = vmatpush1.msra.mxu0 0.0
    %167 = vmatprep.subr.mxu0 0.0
    %168 = vmatpush1.msra.mxu0 0.0
    %169 = vmatprep.subr.mxu0 0.0
    %170 = vmatpush1.msra.mxu0 0.0
    %171 = vmatprep.subr.mxu0 0.0
    %172 = vmatpush1.msra.mxu0 0.0
    %173 = vmatprep.subr.mxu0 0.0
    %174 = vmatpush1.msra.mxu0 0.0
    %175 = vmatprep.subr.mxu0 0.0
    %176 = vmatpush1.msra.mxu0 0.0
    %177 = vmatprep.subr.mxu0 0.0
    %178 = vmatpush1.msra.mxu0 0.0
    %179 = vmatprep.subr.mxu0 0.0
    %180 = vmatpush1.msra.mxu0 0.0
    %181 = vmatprep.mubr.f32.mxu0 0.0
    %182 = vmatmul.mubr.f32.gmra.mrb[0].mxu0 %v111
    %v183 = vpop.f32.mrb[0].mxu0
    %v184 = vadd.f32 0.0, %v183
    %v185 = vpop.f32.mrb[0].mxu0
    %186 = vdwg.mxu0
    %187 = vst [vmem:[#allocation4] sm:$0xff] %v184
    // Predicated region
    $region22: #{tpu_custom_call.1} parent=1 // pred_check
      _
    $region23: #{tpu_custom_call.1} parent=1 // pred_check_branch
      %189 = sbr.rel (0) target = $region25
    $region24: #{tpu_custom_call.1} parent=1 // pred_region
      %s191 = ssub.s32 128, 128
      %192 = vsyncadd [#allocation5], %s191
      %s194 = sshll.u32 [#allocation4], 4
      %s195 = int_to_ptr.vmem [resolvable:$true] %s194
      %197 = dma.vmem_to_hbm [thread:$0]  %s195, 128, %s4, [#allocation5]
    $region25: #{tpu_custom_call.1} parent=1 // pred_fallthru
      _
    // Predicated region
    $region26: #{tpu_custom_call.1} parent=1 // pred_check
      _
    $region27: #{tpu_custom_call.1} parent=1 // pred_check_branch
      %199 = sbr.rel (0) target = $region29
    $region28: #{tpu_custom_call.1} parent=1 // pred_region
      %200 = dma.done [#allocation5], 128
    $region29: #{tpu_custom_call.1} parent=1 // pred_fallthru
      _
    %201 = vsyncpa [#allocation5], 1

</llo_original>
